<compile_context>
chip_gen: v7x
topology: tpu7x:2x2x1
jax: 0.10.0
libtpu: 0.0.40
codegen_flags: <defaults>
</compile_context>

<pallas_src>
import functools
import math

import jax
import jax.numpy as jnp
from jax import lax
from jax.experimental import pallas as pl
from jax.experimental.pallas import tpu as pltpu


def _round_up(x, m):
    return (x + m - 1) // m * m


def _vmem_limit_bytes(per_step_bytes):
    """Scoped-VMEM limit derived from the actual tile footprint, capped per chip."""
    try:
        cap = int(getattr(pltpu.get_tpu_info(), "vmem_capacity_bytes", 128 << 20))
    except Exception:                      # interpret mode / older runtimes
        cap = 64 << 20
    want = int(per_step_bytes) + (4 << 20)  # + pipeline / compiler-internal slack
    return int(max(32 << 20, min(want, (cap * 3) // 4)))


# --------------------------------------------------------------------------
# Linear kernel:  out = x @ W^T + b   (torch Linear layout: W is (Dout, Din))
# --------------------------------------------------------------------------
def _linear_kernel(x_ref, wt_ref, b_ref, o_ref):
    # bf16 operands -> MXU-native single pass; f32 accumulation; bias added in f32.
    acc = jnp.dot(x_ref[...], wt_ref[...], preferred_element_type=jnp.float32)
    o_ref[...] = (acc + b_ref[...]).astype(o_ref.dtype)


def _linear(x2, w, b, *, out_dtype, tile_rows=256):
    """x2: (R, Din); w: (Dout, Din); b: (Dout,). Returns (R, Dout) in out_dtype."""
    R, Din = x2.shape
    Dout = w.shape[0]

    tm = min(max(8, _round_up(tile_rows, 8)), _round_up(R, 8))
    Rp = _round_up(R, tm)
    Dip = _round_up(Din, 128)                       # lane-dense K
    Dop = _round_up(Dout, 128)                      # lane-dense N / stores
    tn = 128
    for cand in (512, 384, 256):                    # largest tile that divides Dop
        if Dop % cand == 0:
            tn = cand
            break
    tn = min(tn, Dop)

    # TODO(synk): in a module setting, pre-pad / pre-transpose the weights once at
    # parameter setup instead of on every forward call.
    xb = x2.astype(jnp.bfloat16)
    if (Rp, Dip) != (R, Din):
        xb = jnp.zeros((Rp, Dip), jnp.bfloat16).at[:R, :Din].set(xb)
    wt = w.T.astype(jnp.bfloat16)
    if (Dip, Dop) != (Din, Dout):
        wt = jnp.zeros((Dip, Dop), jnp.bfloat16).at[:Din, :Dout].set(wt)
    bp = b.astype(jnp.float32).reshape(1, Dout)
    if Dop != Dout:
        bp = jnp.zeros((1, Dop), jnp.float32).at[:, :Dout].set(bp)

    out_itemsize = jnp.dtype(out_dtype).itemsize
    n_i, n_j = Rp // tm, Dop // tn
    cost = pl.CostEstimate(
        flops=int(2 * Rp * Dip * Dop),
        transcendentals=0,
        bytes_accessed=int(n_j * Rp * Dip * 2 + Dip * Dop * 2 + Dop * 4
                           + Rp * Dop * out_itemsize),
    )
    per_step = 2 * (tm * Dip * 2 + Dip * tn * 2 + tn * 4 + tm * tn * out_itemsize)

    out = pl.pallas_call(
        _linear_kernel,
        out_shape=jax.ShapeDtypeStruct((Rp, Dop), out_dtype),
        grid=(n_j, n_i),                                     # W tile resident across rows
        in_specs=[
            pl.BlockSpec((tm, Dip), lambda j, i: (i, 0)),    # activations (streamed)
            pl.BlockSpec((Dip, tn), lambda j, i: (0, j)),    # W^T column tile
            pl.BlockSpec((1, tn), lambda j, i: (0, j)),      # bias tile
        ],
        out_specs=pl.BlockSpec((tm, tn), lambda j, i: (i, j)),
        compiler_params=pltpu.CompilerParams(
            dimension_semantics=("parallel", "parallel"),
            vmem_limit_bytes=_vmem_limit_bytes(per_step)),
        cost_estimate=cost,
    )(xb, wt, bp)

    if (Rp, Dop) != (R, Dout):
        out = out[:R, :Dout]
    return out


# --------------------------------------------------------------------------
# Fused attention kernel: grid (batch, Tq tiles); all N heads per grid step.
# Heads are static lane-slices of the D axis (no HBM head transposes needed).
# --------------------------------------------------------------------------
def _attention_kernel(*refs, n_heads, dk, dv, inv_scale, attend_mode, window,
                      droprate, training, seed, has_mask):
    if has_mask:
        q_ref, k_ref, v_ref, mask_ref, o_ref = refs
    else:
        q_ref, k_ref, v_ref, o_ref = refs
        mask_ref = None

    tq = q_ref.shape[0]
    Tk = k_ref.shape[0]
    NEG = jnp.float32(1e9)
    THRESH = jnp.float32(-5e8)

    # Fold 1/sqrt(d_key_full) into q once: a (tq, D) pass instead of (tq, Tk) per head.
    q_all = (q_ref[...].astype(jnp.float32) * jnp.float32(inv_scale)).astype(q_ref.dtype)
    k_all = k_ref[...]
    v_all = v_ref[...]

    # Fuse attend_mode / window / external masks into ONE additive bias shared by all
    # heads.  Overlapping masks collapse to a single -1e9, which is equivalent through
    # softmax + the all-masked-row correction.
    masking = (attend_mode != 'full') or (window > 0) or has_mask
    bias = None
    if masking:
        masked = None
        if (attend_mode != 'full') or (window > 0):
            rows = pl.program_id(1) * tq + lax.broadcasted_iota(jnp.int32, (tq, Tk), 0)
            cols = lax.broadcasted_iota(jnp.int32, (tq, Tk), 1)
            diff = cols - rows
            if attend_mode == 'only_attend_front':      # triu(1)
                masked = diff >= 1
            elif attend_mode == 'only_attend_back':     # tril(1)  (faithful to torch)
                masked = diff <= 1
            elif attend_mode == 'not_attend_self':      # eye
                masked = diff == 0
            if window > 0:                              # triu(w+1)+tril(w+1), faithful
                wm = (diff >= window + 1) | (diff <= window + 1)
                masked = wm if masked is None else (masked | wm)
        if has_mask:
            em = mask_ref[...] == 0.0
            masked = em if masked is None else (masked | em)
        bias = jnp.where(masked, -NEG, jnp.float32(0.0))

    use_dropout = training and droprate > 0.0
    if use_dropout:
        # TODO(synk): statistically equivalent to torch.nn.Dropout, not bitwise.
        step = pl.program_id(0) * pl.num_programs(1) + pl.program_id(1)
        pltpu.prng_seed(seed + step)
        keep_scale = jnp.float32(1.0 / (1.0 - droprate))
        thr = jnp.uint32(min(int(droprate * (2 ** 32)), 2 ** 32 - 1))

    outs = []
    for h in range(n_heads):
        qh = q_all[:, h * dk:(h + 1) * dk]
        kh = k_all[:, h * dk:(h + 1) * dk]
        vh = v_all[:, h * dv:(h + 1) * dv]
        # (tq, dk) x (Tk, dk) -> (tq, Tk): contract both on the last dim (MXU, f32 acc).
        logits = lax.dot_general(qh, kh, (((1,), (1,)), ((), ())),
                                 preferred_element_type=jnp.float32)
        if bias is not None:
            logits = logits + bias
        m = jnp.max(logits, axis=-1, keepdims=True)
        e = jnp.exp(logits - m)
        denom = jnp.sum(e, axis=-1, keepdims=True)
        probs = e * pl.reciprocal(denom, approx=True)        # EUP, frees the VALU
        if masking:
            # torch: zero rows where every key was masked; row max <= -5e8 <=> all masked
            probs = probs * (m > THRESH).astype(jnp.float32)
        if use_dropout:
            bits = pltpu.bitcast(pltpu.prng_random_bits((tq, Tk)), jnp.uint32)
            probs = jnp.where(bits >= thr, probs * keep_scale, jnp.float32(0.0))
        outs.append(jnp.dot(probs.astype(v_all.dtype), vh,
                            preferred_element_type=jnp.float32))
    # One lane-dense store of all heads; already in merged-head (.., D) layout.
    o_ref[...] = jnp.concatenate(outs, axis=-1).astype(o_ref.dtype)


# --------------------------------------------------------------------------
# Full MultiHeadAttention forward
# --------------------------------------------------------------------------
def multi_head_attention(query, key, value, *, wq, bq, wk, bk, wv, bv,
                         wo=None, bo=None, n_heads, droprate=0.0,
                         attend_mode='full', window=-1, mask=None,
                         training=False, seed=0, use_wo=True, q_block=256):
    assert attend_mode in ('full', 'only_attend_front',
                           'not_attend_self', 'only_attend_back')
    B, Tq, Dk = query.shape
    _, Tk, _ = key.shape
    Dv = value.shape[-1]
    N = n_heads
    dk, dv = Dk // N, Dv // N
    cdt = jnp.bfloat16
    in_dtype = query.dtype

    # ---- input projections (tiled bf16 Pallas linears); fused QKV for self-attn ----
    if query is key and key is value:
        wqkv = jnp.concatenate([wq, wk, wv], axis=0)
        bqkv = jnp.concatenate([bq, bk, bv], axis=0)
        qkv = _linear(query.reshape(B * Tq, Dk), wqkv, bqkv, out_dtype=cdt)
        q = qkv[:, :Dk].reshape(B, Tq, Dk)
        k = qkv[:, Dk:2 * Dk].reshape(B, Tk, Dk)
        v = qkv[:, 2 * Dk:].reshape(B, Tk, Dv)
    else:
        q = _linear(query.reshape(B * Tq, Dk), wq, bq, out_dtype=cdt).reshape(B, Tq, Dk)
        k = _linear(key.reshape(B * Tk, Dk), wk, bk, out_dtype=cdt).reshape(B, Tk, Dk)
        v = _linear(value.reshape(B * Tk, Dv), wv, bv, out_dtype=cdt).reshape(B, Tk, Dv)

    # ---- fused attention (no head split/merge transposes in HBM) ----
    tq = min(max(8, _round_up(q_block, 8)), _round_up(Tq, 8))
    Tq_p = _round_up(Tq, tq)
    if Tq_p != Tq:
        q = jnp.pad(q, ((0, 0), (0, Tq_p - Tq), (0, 0)))

    args = [q, k, v]
    in_specs = [
        pl.BlockSpec((None, tq, Dk), lambda b, qi: (b, qi, 0)),
        pl.BlockSpec((None, Tk, Dk), lambda b, qi: (b, 0, 0)),
        pl.BlockSpec((None, Tk, Dv), lambda b, qi: (b, 0, 0)),
    ]
    mask_bytes = 0
    if mask is not None:
        # (B, Tq, Tk): indexed per batch element, no N-fold head broadcast in HBM.
        mask_f = mask.astype(jnp.float32)
        if Tq_p != Tq:
            mask_f = jnp.pad(mask_f, ((0, 0), (0, Tq_p - Tq), (0, 0)))
        args.append(mask_f)
        in_specs.append(pl.BlockSpec((None, tq, Tk), lambda b, qi: (b, qi, 0)))
        mask_bytes = tq * Tk * 4

    scale = math.sqrt(Dk)          # torch builds Attention(d_key=FULL d_key)
    kernel = functools.partial(
        _attention_kernel, n_heads=N, dk=dk, dv=dv, inv_scale=1.0 / scale,
        attend_mode=attend_mode, window=window, droprate=float(droprate),
        training=bool(training), seed=int(seed), has_mask=mask is not None)

    cost = pl.CostEstimate(
        flops=int(2 * B * Tq_p * Tk * (Dk + Dv)),
        transcendentals=int(B * N * Tq_p * Tk),
        bytes_accessed=int((B * Tq_p * Dk + B * Tk * (Dk + Dv) + B * Tq_p * Dv) * 2
                           + (B * Tq_p * Tk * 4 if mask is not None else 0)),
    )
    per_step = (2 * (tq * Dk + Tk * Dk + Tk * Dv + tq * Dv) * 2
                + 2 * mask_bytes + 6 * tq * Tk * 4)

    out = pl.pallas_call(
        kernel,
        out_shape=jax.ShapeDtypeStruct((B, Tq_p, Dv), cdt),
        grid=(B, Tq_p // tq),
        in_specs=in_specs,
        out_specs=pl.BlockSpec((None, tq, Dv), lambda b, qi: (b, qi, 0)),
        compiler_params=pltpu.CompilerParams(
            dimension_semantics=("parallel", "arbitrary"),
            vmem_limit_bytes=_vmem_limit_bytes(per_step)),
        cost_estimate=cost,
    )(*args)

    if Tq_p != Tq:
        out = out[:, :Tq, :]

    # ---- output projection ----
    if use_wo:
        out = _linear(out.reshape(B * Tq, Dv), wo, bo,
                      out_dtype=in_dtype).reshape(B, Tq, Dk)
    else:
        out = out.astype(in_dtype)
    return out


# --------------------------------------------------------------------------
# Pure-JAX reference (eval-mode, mirrors the torch module; matmul operands in
# bf16 to match the kernel's compute dtype, accumulation in f32)
# --------------------------------------------------------------------------
def _reference_mha(q_in, k_in, v_in, *, wq, bq, wk, bk, wv, bv, wo=None, bo=None,
                   n_heads, attend_mode='full', window=-1, mask=None, use_wo=True):
    bf = jnp.bfloat16

    def lin(x, w, b):
        return jnp.einsum('btd,od->bto', x.astype(bf), w.astype(bf),
                          preferred_element_type=jnp.float32) + b

    q, k, v = lin(q_in, wq, bq), lin(k_in, wk, bk), lin(v_in, wv, bv)
    B, Tq, D = q.shape
    Tk = k.shape[1]
    Dv = v.shape[-1]
    N = n_heads

    def split(x):
        b, t, d = x.shape
        return x.reshape(b, t, N, d // N).transpose(0, 2, 1, 3).reshape(b * N, t, d // N)

    qh, kh, vh = split(q), split(k), split(v)
    dots = jnp.einsum('bqd,bkd->bqk', qh.astype(bf), kh.astype(bf),
                      preferred_element_type=jnp.float32)
    diff = (jnp.arange(Tk)[None, :] - jnp.arange(Tq)[:, None])[None]
    neg = jnp.float32(1e9)
    if attend_mode == 'only_attend_front':
        dots = dots - jnp.where(diff >= 1, neg, 0.0)
    elif attend_mode == 'only_attend_back':
        dots = dots - jnp.where(diff <= 1, neg, 0.0)
    elif attend_mode == 'not_attend_self':
        dots = dots - jnp.where(diff == 0, neg, 0.0)
    if window > 0:
        wmask = ((diff >= window + 1).astype(jnp.float32)
                 + (diff <= window + 1).astype(jnp.float32))
        dots = dots - wmask * neg
    if mask is not None:
        mask_bn = jnp.broadcast_to(mask[:, None].astype(jnp.float32),
                                   (B, N, Tq, Tk)).reshape(B * N, Tq, Tk)
        dots = dots - (1.0 - mask_bn) * neg
    probs = jax.nn.softmax(dots / math.sqrt(D), axis=-1)
    alive = (jnp.sum((dots <= -5e8).astype(jnp.int32), axis=-1, keepdims=True) < Tk)
    probs = probs * alive.astype(jnp.float32)
    out = jnp.einsum('bqk,bkd->bqd', probs.astype(bf), vh.astype(bf),
                     preferred_element_type=jnp.float32)
    out = out.reshape(B, N, Tq, Dv // N).transpose(0, 2, 1, 3).reshape(B, Tq, Dv)
    if use_wo:
        out = jnp.einsum('btd,od->bto', out.astype(bf), wo.astype(bf),
                         preferred_element_type=jnp.float32) + bo
    return out


if __name__ == "__main__":
    # small shapes implied by the module: batch=2, seq=8, d_key=d_value=32, 4 heads
    B, T, D, N = 2, 8, 32, 4
    droprate = 0.1

    key = jax.random.PRNGKey(0)
    ks = jax.random.split(key, 12)
    q_in = jax.random.normal(ks[0], (B, T, D), dtype=jnp.float32)
    k_in = jax.random.normal(ks[1], (B, T, D), dtype=jnp.float32)
    v_in = jax.random.normal(ks[2], (B, T, D), dtype=jnp.float32)

    def init_linear(kw, kb, dout, din):
        bound = 1.0 / math.sqrt(din)
        w = jax.random.uniform(kw, (dout, din), jnp.float32, -bound, bound)
        b = jax.random.uniform(kb, (dout,), jnp.float32, -bound, bound)
        return w, b

    wq, bq = init_linear(ks[3], ks[4], D, D)
    wk, bk = init_linear(ks[5], ks[6], D, D)
    wv, bv = init_linear(ks[7], ks[8], D, D)
    wo, bo = init_linear(ks[9], ks[10], D, D)
    params = dict(wq=wq, bq=bq, wk=wk, bk=bk, wv=wv, bv=bv, wo=wo, bo=bo, n_heads=N)

    tol = dict(atol=2e-2, rtol=2e-2)

    # 1) eval-mode, attend_mode='full'
    out = multi_head_attention(q_in, k_in, v_in, droprate=droprate,
                               attend_mode='full', training=False, **params)
    out = jax.block_until_ready(out)
    ref = _reference_mha(q_in, k_in, v_in, attend_mode='full', **params)
    assert out.shape == (B, T, D)
    assert jnp.allclose(out, ref, **tol), "full-mode mismatch"

    # 2) eval-mode, causal ('only_attend_front')
    out_c = multi_head_attention(q_in, k_in, v_in, droprate=droprate,
                                 attend_mode='only_attend_front',
                                 training=False, **params)
    out_c = jax.block_until_ready(out_c)
    ref_c = _reference_mha(q_in, k_in, v_in, attend_mode='only_attend_front', **params)
    assert jnp.allclose(out_c, ref_c, **tol), "causal mismatch"

    # 3) eval-mode, self-attention (fused QKV path) + external mask, including one
    #    fully-masked query row (exercises the all-masked-row correction).
    mask = (jax.random.uniform(ks[11], (B, T, T)) > 0.3).astype(jnp.float32)
    mask = mask.at[:, :, 0].set(1.0)        # at least one visible key per row ...
    mask = mask.at[0, 2, :].set(0.0)        # ... except this row: fully masked
    out_m = multi_head_attention(q_in, q_in, q_in, droprate=droprate,
                                 attend_mode='full', mask=mask,
                                 training=False, **params)
    out_m = jax.block_until_ready(out_m)
    ref_m = _reference_mha(q_in, q_in, q_in, attend_mode='full', mask=mask, **params)
    assert jnp.allclose(out_m, ref_m, **tol), "masked/self-attention mismatch"

    # TODO(synk): gumbel_attend training softmax and the stateful init_forward()
    # incremental-decoding closure are not implemented in the kernels.
    print("KERNEL_OK")
</pallas_src>

<mosaic_0001>
module attributes {stable_mosaic.version = 11 : i64} {
  func.func @_linear_kernel(%arg0: i32, %arg1: i32, %arg2: memref<16x128xbf16, #tpu.memory_space<vmem>>, %arg3: memref<128x128xbf16, #tpu.memory_space<vmem>>, %arg4: memref<1x128xf32, #tpu.memory_space<vmem>>, %arg5: memref<16x128xbf16, #tpu.memory_space<vmem>>) attributes {dimension_semantics = [#tpu.dimension_semantics<parallel>, #tpu.dimension_semantics<parallel>], iteration_bounds = array<i64: 1, 1>, scalar_prefetch = 0 : i64, scratch_operands = 0 : i64, tpu.core_type = #tpu.core_type<tc>, window_params = [{transform_indices = @transform_0, window_bounds = array<i64: 16, 128>}, {transform_indices = @transform_1, window_bounds = array<i64: 128, 128>}, {transform_indices = @transform_2, window_bounds = array<i64: 1, 128>}, {transform_indices = @transform_3, window_bounds = array<i64: 16, 128>}]} {
    %c0 = arith.constant 0 : index
    %c0_0 = arith.constant 0 : index
    %0 = vector.load %arg2[%c0, %c0_0] : memref<16x128xbf16, #tpu.memory_space<vmem>>, vector<16x128xbf16>
    %c0_1 = arith.constant 0 : index
    %c0_2 = arith.constant 0 : index
    %1 = vector.load %arg3[%c0_1, %c0_2] : memref<128x128xbf16, #tpu.memory_space<vmem>>, vector<128x128xbf16>
    %cst = arith.constant dense<0.000000e+00> : vector<16x128xf32>
    %2 = tpu.matmul %0, %1, %cst {dimension_numbers = #tpu.dot_dimension_numbers<[1], [0], [0], [1], [0, 0, 1, 1], [], []>} : vector<16x128xbf16>, vector<128x128xbf16>, vector<16x128xf32> -> vector<16x128xf32>
    %c0_3 = arith.constant 0 : index
    %c0_4 = arith.constant 0 : index
    %3 = vector.load %arg4[%c0_3, %c0_4] : memref<1x128xf32, #tpu.memory_space<vmem>>, vector<1x128xf32>
    %4 = vector.broadcast %3 : vector<1x128xf32> to vector<16x128xf32>
    %5 = arith.addf %2, %4 : vector<16x128xf32>
    %6 = arith.truncf %5 : vector<16x128xf32> to vector<16x128xbf16>
    %c0_5 = arith.constant 0 : index
    %c0_6 = arith.constant 0 : index
    %7 = vector.load %arg5[%c0_5, %c0_6] : memref<16x128xbf16, #tpu.memory_space<vmem>>, vector<16x128xbf16>
    tpu.vector_store %arg5[%c0_5, %c0_6], %6 {strides = array<i32>} : memref<16x128xbf16, #tpu.memory_space<vmem>>, vector<16x128xbf16>,
    return
  }
  func.func @transform_0(%arg0: i32, %arg1: i32) -> (i32, i32) {
    %c0_i32 = arith.constant 0 : i32
    %c0_i32_0 = arith.constant 0 : i32
    return %arg1, %c0_i32 : i32, i32
  }
  func.func @transform_1(%arg0: i32, %arg1: i32) -> (i32, i32) {
    %c0_i32 = arith.constant 0 : i32
    %c0_i32_0 = arith.constant 0 : i32
    return %c0_i32, %arg0 : i32, i32
  }
  func.func @transform_2(%arg0: i32, %arg1: i32) -> (i32, i32) {
    %c0_i32 = arith.constant 0 : i32
    %c0_i32_0 = arith.constant 0 : i32
    return %c0_i32, %arg0 : i32, i32
  }
  func.func @transform_3(%arg0: i32, %arg1: i32) -> (i32, i32) {
    %c0_i32 = arith.constant 0 : i32
    return %arg1, %arg0 : i32, i32
  }
}

</mosaic_0001>

<llo_original>
// kernel: tpu_custom_call.1
$region0: #{tpu_custom_call.1}
  #allocation0 [shape = 'u32[]', space=smem, size = 0x4, offset = 0x4, fixed_abs, tag = 'smem constant byte address 0x4 - core index']
  #allocation1 [shape = 'u32[144,128]{1,0:T(1,128)}', space=vmem, size = 0x12000, scoped, tag = 'internal scratch']
  %s0 = inlined_call_operand.hbm [shape: bf16[16,128], index: 0, kind: input, shape index: {}]
  %s1 = inlined_call_operand.hbm [shape: bf16[128,128], index: 1, kind: input, shape index: {}]
  %s2 = inlined_call_operand.vmem [shape: f32[1,128], index: 2, kind: input, shape index: {}]
  %s3 = inlined_call_operand.hbm [shape: bf16[16,128], index: 3, kind: output, shape index: {}]
  %s4 = sld [smem:[#allocation0]]
  $region30: #{tpu_custom_call.1} parent=0
    _
  %s6 = ssub.s32 1, %s4
  %s7 = scalar_select 0, %s6, %s4
  $region1: #{tpu_custom_call.1} parent=0
    #allocation2 [shape = 'u8[4096]{0}', space=vmem, size = 0x1000, scoped, tag = 'input window, operand 0, single buffered']
    #allocation3 [shape = 's32[1]{0}', space=sflag, size = 0x4, scoped, tag = 'scoped memory for tpu_custom_call.1']
    #allocation4 [shape = 's32[1]{0}', space=sflag, size = 0x4, scoped, tag = 'scoped memory for tpu_custom_call.1']
    #allocation5 [shape = 'u8[32768]{0}', space=vmem, size = 0x8000, scoped, tag = 'input window, operand 1, single buffered']
    #allocation6 [shape = 's32[1]{0}', space=sflag, size = 0x4, scoped, tag = 'scoped memory for tpu_custom_call.1']
    #allocation7 [shape = 'u8[4096]{0}', space=vmem, size = 0x1000, scoped, tag = 'output window, operand 0, single buffered']
    %8 = vsyncpa [#allocation3], 0
    %9 = vsyncpa [#allocation6], 0
    %10 = vsyncpa [#allocation4], 0
    // Predicated region
    $region2: #{tpu_custom_call.1} parent=1 // pred_check
      _
    $region3: #{tpu_custom_call.1} parent=1 // pred_check_branch
      %12 = sbr.rel (0) target = $region5
    $region4: #{tpu_custom_call.1} parent=1 // pred_region
      %s14 = ssub.s32 128, 128
      %15 = vsyncadd [#allocation3], %s14
      %s16 = sshll.u32 [#allocation2], 4
      %s17 = int_to_ptr.vmem [resolvable:$true] %s16
      %22 = dma.hbm_to_vmem [thread:$0]  %s0, 128, %s17, [#allocation3], 64, 64, 4
    $region5: #{tpu_custom_call.1} parent=1 // pred_fallthru
      _
    // Predicated region
    $region6: #{tpu_custom_call.1} parent=1 // pred_check
      _
    $region7: #{tpu_custom_call.1} parent=1 // pred_check_branch
      %24 = sbr.rel (0) target = $region9
    $region8: #{tpu_custom_call.1} parent=1 // pred_region
      %s26 = ssub.s32 1024, 1024
      %27 = vsyncadd [#allocation6], %s26
      %s28 = sshll.u32 [#allocation5], 4
      %s29 = int_to_ptr.vmem [resolvable:$true] %s28
      %34 = dma.hbm_to_vmem [thread:$0]  %s1, 1024, %s29, [#allocation6], 64, 64, 4
    $region9: #{tpu_custom_call.1} parent=1 // pred_fallthru
      _
    // Predicated region
    $region10: #{tpu_custom_call.1} parent=1 // pred_check
      _
    $region11: #{tpu_custom_call.1} parent=1 // pred_check_branch
      %36 = sbr.rel (0) target = $region13
    $region12: #{tpu_custom_call.1} parent=1 // pred_region
      _
    $region13: #{tpu_custom_call.1} parent=1 // pred_fallthru
      _
    // Predicated region
    $region14: #{tpu_custom_call.1} parent=1 // pred_check
      _
    $region15: #{tpu_custom_call.1} parent=1 // pred_check_branch
      %38 = sbr.rel (0) target = $region17
    $region16: #{tpu_custom_call.1} parent=1 // pred_region
      %39 = dma.done [#allocation3], 128
    $region17: #{tpu_custom_call.1} parent=1 // pred_fallthru
      _
    // Predicated region
    $region18: #{tpu_custom_call.1} parent=1 // pred_check
      _
    $region19: #{tpu_custom_call.1} parent=1 // pred_check_branch
      %41 = sbr.rel (0) target = $region21
    $region20: #{tpu_custom_call.1} parent=1 // pred_region
      %42 = dma.done [#allocation6], 1024
    $region21: #{tpu_custom_call.1} parent=1 // pred_fallthru
      _
    %v44 = vld [vmem:[#allocation2] sm:$0xf]
    %v45 = vld [vmem:[#allocation2 + $0x4] sm:$0xf]
    %v46 = vld [vmem:[#allocation5] sm:$0xf]
    %v47 = vld [vmem:[#allocation5 + $0x4] sm:$0xf]
    %v48 = vld [vmem:[#allocation5 + $0x8] sm:$0xf]
    %v49 = vld [vmem:[#allocation5 + $0xc] sm:$0xf]
    %v50 = vld [vmem:[#allocation5 + $0x10] sm:$0xf]
    %v51 = vld [vmem:[#allocation5 + $0x14] sm:$0xf]
    %v52 = vld [vmem:[#allocation5 + $0x18] sm:$0xf]
    %v53 = vld [vmem:[#allocation5 + $0x1c] sm:$0xf]
    %v54 = vld [vmem:[#allocation5 + $0x20] sm:$0xf]
    %v55 = vld [vmem:[#allocation5 + $0x24] sm:$0xf]
    %v56 = vld [vmem:[#allocation5 + $0x28] sm:$0xf]
    %v57 = vld [vmem:[#allocation5 + $0x2c] sm:$0xf]
    %v58 = vld [vmem:[#allocation5 + $0x30] sm:$0xf]
    %v59 = vld [vmem:[#allocation5 + $0x34] sm:$0xf]
    %v60 = vld [vmem:[#allocation5 + $0x38] sm:$0xf]
    %v61 = vld [vmem:[#allocation5 + $0x3c] sm:$0xf]
    %v62 = vld [vmem:[%s2] sm:$0x1]
    %v64 = vlaneseq
    %v65 = vshrl.u32 %v64, 7
    %v66 = vsub.s32 0, %v65
    %v67 = vrot.slane %v62, %v66
    %v71 = vunpack.c.l.b16 %v44
    %v72 = vunpack.c.l.b16 %v45
    %v73 = vpack.c.b16 %v72, %v71
    %v91 = vunpack.c.l.b16 %v46
    %v92 = vunpack.c.l.b16 %v47
    %v93 = vunpack.c.l.b16 %v48
    %v94 = vunpack.c.l.b16 %v49
    %v95 = vunpack.c.l.b16 %v50
    %v96 = vunpack.c.l.b16 %v51
    %v97 = vunpack.c.l.b16 %v52
    %v98 = vunpack.c.l.b16 %v53
    %v99 = vunpack.c.l.b16 %v54
    %v100 = vunpack.c.l.b16 %v55
    %v101 = vunpack.c.l.b16 %v56
    %v102 = vunpack.c.l.b16 %v57
    %v103 = vunpack.c.l.b16 %v58
    %v104 = vunpack.c.l.b16 %v59
    %v105 = vunpack.c.l.b16 %v60
    %v106 = vunpack.c.l.b16 %v61
    %v107 = vpack.c.b16 %v92, %v91
    %v108 = vpack.c.b16 %v94, %v93
    %v109 = vpack.c.b16 %v96, %v95
    %v110 = vpack.c.b16 %v98, %v97
    %v111 = vpack.c.b16 %v100, %v99
    %v112 = vpack.c.b16 %v102, %v101
    %v113 = vpack.c.b16 %v104, %v103
    %v114 = vpack.c.b16 %v106, %v105
    %123 = vmatprep.subr.bf16.mxu0 0
    %124 = vmatpush1.bf16.msra.mxu0 %v107
    %125 = vmatprep.subr.bf16.mxu0 0
    %126 = vmatpush1.bf16.msra.mxu0 %v108
    %127 = vmatprep.subr.bf16.mxu0 0
    %128 = vmatpush1.bf16.msra.mxu0 %v109
    %129 = vmatprep.subr.bf16.mxu0 0
    %130 = vmatpush1.bf16.msra.mxu0 %v110
    %131 = vmatprep.subr.bf16.mxu0 0
    %132 = vmatpush1.bf16.msra.mxu0 %v111
    %133 = vmatprep.subr.bf16.mxu0 0
    %134 = vmatpush1.bf16.msra.mxu0 %v112
    %135 = vmatprep.subr.bf16.mxu0 0
    %136 = vmatpush1.bf16.msra.mxu0 %v113
    %137 = vmatprep.subr.bf16.mxu0 0
    %138 = vmatpush1.bf16.msra.mxu0 %v114
    %139 = vmatprep.subr.bf16.mxu0 0
    %140 = vmatpush1.bf16.msra.mxu0 0
    %141 = vmatprep.subr.bf16.mxu0 0
    %142 = vmatpush1.bf16.msra.mxu0 0
    %143 = vmatprep.subr.bf16.mxu0 0
    %144 = vmatpush1.bf16.msra.mxu0 0
    %145 = vmatprep.subr.bf16.mxu0 0
    %146 = vmatpush1.bf16.msra.mxu0 0
    %147 = vmatprep.subr.bf16.mxu0 0
    %148 = vmatpush1.bf16.msra.mxu0 0
    %149 = vmatprep.subr.bf16.mxu0 0
    %150 = vmatpush1.bf16.msra.mxu0 0
    %151 = vmatprep.subr.bf16.mxu0 0
    %152 = vmatpush1.bf16.msra.mxu0 0
    %153 = vmatprep.subr.bf16.mxu0 0
    %154 = vmatpush1.bf16.msra.mxu0 0
    %155 = vmatprep.mubr.bf16.mxu0 0
    %156 = vmatmul.mubr.bf16.gmra.mrb[0].mxu0 %v73
    %v157 = vpop.f32.mrb[0].mxu0
    %v158 = vadd.f32 %v67, %v157
    %v159 = vpop.f32.mrb[0].mxu0
    %v160 = vpop.f32.mrb[0].mxu0
    %v161 = vadd.f32 %v67, %v160
    %v162 = vpop.f32.mrb[0].mxu0
    %163 = vdwg.mxu0
    %v164 = vpack.c.bf16 %v161, %v158
    %v166 = vunpack.c.l.b16 %v164
    %v167 = vunpack.c.h.b16 %v164
    %v168 = vpack.c.b16 %v166, %v166
    %v169 = vpack.c.b16 %v167, %v167
    %172 = vst [vmem:[#allocation7] sm:$0xf] %v168
    %173 = vst [vmem:[#allocation7 + $0x4] sm:$0xf] %v169
    // Predicated region
    $region22: #{tpu_custom_call.1} parent=1 // pred_check
      _
    $region23: #{tpu_custom_call.1} parent=1 // pred_check_branch
      %175 = sbr.rel (0) target = $region25
    $region24: #{tpu_custom_call.1} parent=1 // pred_region
      %s177 = ssub.s32 128, 128
      %178 = vsyncadd [#allocation4], %s177
      %s179 = sshll.u32 [#allocation7], 4
      %s180 = int_to_ptr.vmem [resolvable:$true] %s179
      %185 = dma.vmem_to_hbm [thread:$0]  %s180, 128, %s3, [#allocation4], 64, 64, 4
    $region25: #{tpu_custom_call.1} parent=1 // pred_fallthru
      _
    // Predicated region
    $region26: #{tpu_custom_call.1} parent=1 // pred_check
      _
    $region27: #{tpu_custom_call.1} parent=1 // pred_check_branch
      %187 = sbr.rel (0) target = $region29
    $region28: #{tpu_custom_call.1} parent=1 // pred_region
      %188 = dma.done [#allocation4], 128
    $region29: #{tpu_custom_call.1} parent=1 // pred_fallthru
      _
    %189 = vsyncpa [#allocation3], 1
    %190 = vsyncpa [#allocation6], 1
    %191 = vsyncpa [#allocation4], 1

</llo_original>
